<compile_context>
chip_gen: v5e
topology: v5e:2x2
jax: 0.10.0
libtpu: 0.0.40
codegen_flags: <defaults>
</compile_context>

<pallas_src>
import functools

import jax
import jax.numpy as jnp
from jax.experimental import pallas as pl
from jax.experimental.pallas import tpu as pltpu


def _fused_mlp_kernel(xt_ref, w_ref, b_ref, o_ref):
    # xt_ref: (K, TB) f32 VMEM  — features on sublanes, batch on lanes
    # w_ref:  (K, 1)  f32 VMEM  — fused weight column (w1 @ w2)
    # b_ref:  (1,)    f32 SMEM  — fused bias scalar  (b1 @ w2 + b2)
    # o_ref:  (1, TB) f32 VMEM  — lane-dense output row
    prod = xt_ref[...] * w_ref[...]               # VPU broadcast multiply
    acc = jnp.sum(prod, axis=0, keepdims=True)    # sublane reduce (XLU slot)
    o_ref[...] = (acc + b_ref[0]).astype(o_ref.dtype)


def fuse_params(w1, b1, w2, b2):
    """Fold the two linear layers into one (valid: no nonlinearity between).

    Call once per weight update, NOT per forward.
    Returns (w_col (10,1) f32, b_fused (1,) f32).
    """
    w_col = (w1 @ w2).astype(jnp.float32)                      # (10, 1)
    b_fused = (b1 @ w2 + b2).reshape(1).astype(jnp.float32)    # (1,)
    return w_col, b_fused


def _ceil_div(a, b):
    return -(-a // b)


@functools.partial(jax.jit, static_argnames=("batch_tile",))
def mlp_forward(x, w_col, b_fused, *, batch_tile=2048):
    """y = linear2(linear1(x)) with pre-fused params; x is (B, 10) f32."""
    B, K = x.shape

    # Tile selection: single block for small batches; for large batches use
    # ceil(B / batch_tile) roughly-equal, 128-lane-aligned tiles so the grid
    # always has >= 2 balanced steps (v7x megacore) and tiny tail waste.
    if B <= batch_tile:
        num_tiles, tb = 1, B
    else:
        num_tiles = _ceil_div(B, batch_tile)
        tb = _ceil_div(_ceil_div(B, num_tiles), 128) * 128
    b_pad = tb * num_tiles

    # Pad batch to an exact tile multiple, then present it lane-dense (K, Bp).
    # Pad + transpose + pallas_call + slice all live in this one jitted
    # program; allow_input_fusion permits XLA to fuse the transpose into the
    # kernel's input rather than materializing x.T as a separate HBM pass.
    xp = x if b_pad == B else jnp.pad(x, ((0, b_pad - B), (0, 0)))
    xt = xp.T                                                  # (K, Bp)

    yt = pl.pallas_call(
        _fused_mlp_kernel,
        out_shape=jax.ShapeDtypeStruct((1, b_pad), jnp.float32),
        grid=(num_tiles,),
        in_specs=[
            pl.BlockSpec((K, tb), lambda i: (0, i)),           # x tile (pipelined)
            pl.BlockSpec((K, 1), lambda i: (0, 0)),            # fused weight column
            pl.BlockSpec(memory_space=pltpu.SMEM),             # fused bias scalar
        ],
        out_specs=pl.BlockSpec((1, tb), lambda i: (0, i)),
        compiler_params=pltpu.CompilerParams(
            dimension_semantics=("parallel",),
            allow_input_fusion=[True, False, False],
        ),
    )(xt, w_col, b_fused)

    # (1, Bp) -> (B, 1); same flat memory order, so this is metadata only.
    return yt[0, :B].reshape(B, 1)


def init_params(key):
    """Deterministic init mirroring nn.Linear's U(-1/sqrt(fan_in), 1/sqrt(fan_in))."""
    k1, k2, k3, k4 = jax.random.split(key, 4)
    bound1 = 1.0 / jnp.sqrt(10.0)
    bound2 = 1.0 / jnp.sqrt(5.0)
    # Stored as (in_features, out_features) so the math is x @ W + b.
    w1 = jax.random.uniform(k1, (10, 5), jnp.float32, -bound1, bound1)
    b1 = jax.random.uniform(k2, (1, 5), jnp.float32, -bound1, bound1)
    w2 = jax.random.uniform(k3, (5, 1), jnp.float32, -bound2, bound2)
    b2 = jax.random.uniform(k4, (1, 1), jnp.float32, -bound2, bound2)
    return w1, b1, w2, b2


if __name__ == "__main__":
    key = jax.random.PRNGKey(0)
    kx, kp, kx2, kx3 = jax.random.split(key, 4)

    w1, b1, w2, b2 = init_params(kp)
    # Fused params computed once (per weight update), outside the forward path.
    w_col, b_fused = fuse_params(w1, b1, w2, b2)

    def ref_fn(x):
        return (x @ w1 + b1) @ w2 + b2

    # Small batch — single-tile path, matching the PyTorch module's forward.
    B = 8
    x = jax.random.normal(kx, (B, 10), jnp.float32)
    out = jax.block_until_ready(mlp_forward(x, w_col, b_fused))
    assert out.shape == (B, 1)
    assert jnp.allclose(out, ref_fn(x), atol=1e-5, rtol=1e-5)

    # Larger batch, exact tile multiple — multi-step pipelined / parallel grid.
    B2 = 4096
    x2 = jax.random.normal(kx2, (B2, 10), jnp.float32)
    out2 = jax.block_until_ready(mlp_forward(x2, w_col, b_fused))
    assert out2.shape == (B2, 1)
    assert jnp.allclose(out2, ref_fn(x2), atol=1e-5, rtol=1e-5)

    # Larger batch, NOT a tile multiple — exercises padding + balanced tiles.
    B3 = 5000
    x3 = jax.random.normal(kx3, (B3, 10), jnp.float32)
    out3 = jax.block_until_ready(mlp_forward(x3, w_col, b_fused))
    assert out3.shape == (B3, 1)
    assert jnp.allclose(out3, ref_fn(x3), atol=1e-5, rtol=1e-5)

    print("KERNEL_OK")
</pallas_src>

<mosaic_0001>
module attributes {stable_mosaic.version = 11 : i64} {
  func.func @_fused_mlp_kernel(%arg0: i32, %arg1: memref<10x8xf32, #tpu.memory_space<vmem>>, %arg2: memref<10x1xf32, #tpu.memory_space<vmem>>, %arg3: memref<1xf32, #tpu.memory_space<smem>>, %arg4: memref<1x8xf32, #tpu.memory_space<vmem>>) attributes {dimension_semantics = [#tpu.dimension_semantics<parallel>], iteration_bounds = array<i64: 1>, scalar_prefetch = 0 : i64, scratch_operands = 0 : i64, tpu.core_type = #tpu.core_type<tc>, window_params = [{transform_indices = @transform_0, window_bounds = array<i64: 10, 8>}, {pipeline_mode = #tpu.pipeline_mode<synchronous>, transform_indices = @transform_1, window_bounds = array<i64: 10, 1>}, {transform_indices = @transform_2, window_bounds = array<i64: 1>}, {transform_indices = @transform_3, window_bounds = array<i64: 1, 8>}]} {
    %c0 = arith.constant 0 : index
    %c0_0 = arith.constant 0 : index
    %0 = vector.load %arg1[%c0, %c0_0] : memref<10x8xf32, #tpu.memory_space<vmem>>, vector<10x8xf32>
    %c0_1 = arith.constant 0 : index
    %c0_2 = arith.constant 0 : index
    %1 = vector.load %arg2[%c0_1, %c0_2] : memref<10x1xf32, #tpu.memory_space<vmem>>, vector<10x1xf32>
    %2 = vector.broadcast %1 : vector<10x1xf32> to vector<10x8xf32>
    %3 = arith.mulf %0, %2 : vector<10x8xf32>
    %cst = arith.constant dense<0.000000e+00> : vector<8xf32>
    %4 = vector.multi_reduction <add>, %3, %cst [0] : vector<10x8xf32> to vector<8xf32>
    %5 = vector.shape_cast %4 : vector<8xf32> to vector<1x8xf32>
    %c0_3 = arith.constant 0 : index
    %6 = memref.load %arg3[%c0_3] : memref<1xf32, #tpu.memory_space<smem>>
    %7 = vector.broadcast %6 : f32 to vector<1x8xf32>
    %8 = arith.addf %5, %7 : vector<1x8xf32>
    %c0_4 = arith.constant 0 : index
    %c0_5 = arith.constant 0 : index
    %9 = vector.load %arg4[%c0_4, %c0_5] : memref<1x8xf32, #tpu.memory_space<vmem>>, vector<1x8xf32>
    tpu.vector_store %arg4[%c0_4, %c0_5], %8 {strides = array<i32>} : memref<1x8xf32, #tpu.memory_space<vmem>>, vector<1x8xf32>,
    return
  }
  func.func @transform_0(%arg0: i32) -> (i32, i32) {
    %c0_i32 = arith.constant 0 : i32
    %c0_i32_0 = arith.constant 0 : i32
    return %c0_i32, %arg0 : i32, i32
  }
  func.func @transform_1(%arg0: i32) -> (i32, i32) {
    %c0_i32 = arith.constant 0 : i32
    %c0_i32_0 = arith.constant 0 : i32
    %c0_i32_1 = arith.constant 0 : i32
    return %c0_i32, %c0_i32_0 : i32, i32
  }
  func.func @transform_2(%arg0: i32) -> i32 {
    %c0_i32 = arith.constant 0 : i32
    %c0_i32_0 = arith.constant 0 : i32
    return %c0_i32 : i32
  }
  func.func @transform_3(%arg0: i32) -> (i32, i32) {
    %c0_i32 = arith.constant 0 : i32
    %c0_i32_0 = arith.constant 0 : i32
    return %c0_i32, %arg0 : i32, i32
  }
}

</mosaic_0001>

<llo_original>
// kernel: mlp_forward.2
$region0: #{mlp_forward.2}
  #allocation0 [shape = 'u32[]', space=smem, size = 0x4, offset = 0x4, fixed_abs, tag = 'smem constant byte address 0x4 - core index']
  #allocation1 [shape = 'u32[72,128]{1,0:T(1,128)}', space=vmem, size = 0x9000, scoped, tag = 'internal scratch']
  #allocation2 [shape = 'f32[1]{0:T(128)S(6)}', space=smem, size = 0x200, scoped, tag = 'scoped memory for mlp_forward.2']
  %s0 = inlined_call_operand.vmem [shape: f32[10,1], index: 0, kind: input, shape index: {}]
  %s1 = inlined_call_operand.<no memory space> [shape: f32[1], index: 1, kind: input, shape index: {}]
  %s2 = inlined_call_operand.vmem [shape: f32[8,10], index: 2, kind: input, shape index: {}]
  %s3 = inlined_call_operand.hbm [shape: f32[1,8], index: 3, kind: output, shape index: {}]
  %s4 = sld [smem:[#allocation0]]
  $region22: #{mlp_forward.2} parent=0
    _
  %s6 = ssub.s32 1, %s4
  %s7 = scalar_select 0, %s6, %s4
  %8 = sst [smem:[#allocation2]] %s1
  $region1: #{mlp_forward.2} parent=0
    #allocation3 [shape = 'u8[512]{0}', space=vmem, size = 0x400, scoped, tag = 'output window, operand 0, single buffered']
    #allocation4 [shape = 's32[1]{0}', space=sflag, size = 0x4, scoped, tag = 'scoped memory for mlp_forward.2']
    #allocation5 [shape = 'u8[8192]{0}', space=vmem, size = 0x2000, dematerialized = true, scoped, tag = 'FusionAdapter Buffer %fusion.1 = f32[10,8]{1,0:T(8,128)} fusion(%param_2.1), kind=kLoop, calls=%fused_computation.1.clone, metadata={op_name="jit(mlp_forward)/transpose" stack_frame_id=7}']
    %9 = vsyncpa [#allocation4], 0
    // Predicated region
    $region2: #{mlp_forward.2} parent=1 // pred_check
      _
    $region3: #{mlp_forward.2} parent=1 // pred_check_branch
      %11 = sbr.rel (0) target = $region5
    $region4: #{mlp_forward.2} parent=1 // pred_region
      _
    $region5: #{mlp_forward.2} parent=1 // pred_fallthru
      _
    // Predicated region
    $region6: #{mlp_forward.2} parent=1 // pred_check
      _
    $region7: #{mlp_forward.2} parent=1 // pred_check_branch
      %13 = sbr.rel (0) target = $region9
    $region8: #{mlp_forward.2} parent=1 // pred_region
      _
    $region9: #{mlp_forward.2} parent=1 // pred_fallthru
      _
    // Predicated region
    $region10: #{mlp_forward.2} parent=1 // pred_check
      _
    $region11: #{mlp_forward.2} parent=1 // pred_check_branch
      %15 = sbr.rel (0) target = $region13
    $region12: #{mlp_forward.2} parent=1 // pred_region
      _
    $region13: #{mlp_forward.2} parent=1 // pred_fallthru
      _
    %v16 = vld [vmem:[%s2] sm:$0xff]
    %s18 = ssub.s32 256, 1
    %19 = vst [vmem:[#allocation5] sm:%s18] %v16
    %s20 = scalar_lea.vmem %s2, 8
    %v21 = vld [vmem:[%s20] sm:$0xff]
    %s22 = scalar_lea.vmem [#allocation5], 8
    %s24 = ssub.s32 256, 1
    %25 = vst [vmem:[%s22] sm:%s24] %v21
    %v26 = vld [vmem:[#allocation5] sm:$0xff]
    %v27 = vld [vmem:[#allocation5 + $0x8] sm:$0x3]
    %v28 = vld [vmem:[%s0] sm:$0xff]
    %v29 = vld [vmem:[%s0 + $0x8] sm:$0x3]
    %31 = vset.pattern.permute.xlu0 0
    %32 = vperm.xlu0 %31, %v28
    %v33 = vpop.permute.xlu0 %32
    %36 = vset.pattern.permute.xlu0 0
    %37 = vperm.xlu0 %36, %v29
    %v38 = vpop.permute.xlu0 %37
    %v40 = vmul.f32 %v26, %v33
    %v41 = vmul.f32 %v27, %v38
    %vm42 = vcmask 64512
    %v43 = vsel %vm42, %v40, 0.0
    %vm44 = vcmask 58368
    %v45 = vsel %vm44, %v41, 0.0
    %v46 = vadd.f32 %v43, %v45
    %v47 = vrot.slane %v46, 4
    %v48 = vadd.f32 %v46, %v47
    %v49 = vrot.slane %v48, 2
    %v50 = vadd.f32 %v48, %v49
    %v51 = vrot.slane %v50, 1
    %v52 = vadd.f32 %v50, %v51
    %s53 = sld [smem:[#allocation2]]
    %v54 = vstv %s53
    %v55 = vadd.f32 %v52, %v54
    %vm56 = vcmask 57344
    %57 = vst.msk [vmem:[#allocation3] sm:$0x1] %vm56, %v55
    // Predicated region
    $region14: #{mlp_forward.2} parent=1 // pred_check
      _
    $region15: #{mlp_forward.2} parent=1 // pred_check_branch
      %59 = sbr.rel (0) target = $region17
    $region16: #{mlp_forward.2} parent=1 // pred_region
      %61 = vsyncadd [#allocation4], 0
      %s63 = sshll.u32 [#allocation3], 4
      %s64 = int_to_ptr.vmem [resolvable:$true] %s63
      %s65 = sshll.u32 %s3, 4
      %s66 = int_to_ptr.hbm [resolvable:$true] %s65
      %68 = dma.vmem_to_hbm [thread:$0]  %s64, 16, %s66, [#allocation4]
    $region17: #{mlp_forward.2} parent=1 // pred_fallthru
      _
    // Predicated region
    $region18: #{mlp_forward.2} parent=1 // pred_check
      _
    $region19: #{mlp_forward.2} parent=1 // pred_check_branch
      %70 = sbr.rel (0) target = $region21
    $region20: #{mlp_forward.2} parent=1 // pred_region
      %72 = dma.done [#allocation4], 16
    $region21: #{mlp_forward.2} parent=1 // pred_fallthru
      _
    %73 = vsyncpa [#allocation4], 1

</llo_original>
